<compile_context>
chip_gen: v6e
topology: v6e:2x2x1
jax: 0.10.0
libtpu: 0.0.40
codegen_flags: <defaults>
</compile_context>

<pallas_src>
import jax
import jax.numpy as jnp
from jax.experimental import pallas as pl
from jax.experimental.pallas import tpu as pltpu


def _round_up(v, m):
    return (v + m - 1) // m * m


# ---------------------------------------------------------------------------
# Fused kernel: all layers of the MLP on one [tile_n, n_features] tile
# ---------------------------------------------------------------------------
def _make_fused_mlp_kernel(relu_flags, mxu_dtype):
    num_layers = len(relu_flags)

    def kernel(x_ref, *refs):
        # refs = (w0, b0, w1, b1, ..., w_{L-1}, b_{L-1}, o_ref)
        o_ref = refs[-1]
        acc = x_ref[...]
        for li in range(num_layers):            # static unroll over layers
            w = refs[2 * li][...]
            b = refs[2 * li + 1][...]
            acc = jnp.dot(acc, w, preferred_element_type=jnp.float32) + b
            if relu_flags[li]:
                acc = jnp.maximum(acc, 0.0)     # ReLU (Dropout = identity at inference)
            if li < num_layers - 1:
                acc = acc.astype(mxu_dtype)     # keep the MXU in its native dtype
        o_ref[...] = acc.astype(o_ref.dtype)

    return kernel


# ---------------------------------------------------------------------------
# One-time parameter preparation (hoisted out of the hot path)
# ---------------------------------------------------------------------------
def prepare_params(params, mxu_dtype=jnp.bfloat16):
    """Cast weights to the MXU dtype, reshape biases to (1, fout) f32 rows and
    extract the static per-layer ReLU flags."""
    ws, bs, relu_flags = [], [], []
    for w, b, relu in params:
        ws.append(jnp.asarray(w, mxu_dtype))
        bs.append(jnp.asarray(b, jnp.float32).reshape(1, -1))
        relu_flags.append(bool(relu))
    return tuple(ws), tuple(bs), tuple(relu_flags), mxu_dtype


# ---------------------------------------------------------------------------
# Wrapper: row tiling only, single pallas_call
# ---------------------------------------------------------------------------
def mlp_addr_fused(x, prepared, *, tile_n=1024):
    """Full FCsBlock forward as one Pallas kernel. x: [N, n_features]."""
    ws, bs, relu_flags, mxu_dtype = prepared
    n, fin = x.shape
    n_classes = ws[-1].shape[1]

    x = x.astype(mxu_dtype)

    # Row tiling (no padding). Sublane multiple depends on MXU dtype packing.
    sub = 16 if mxu_dtype == jnp.bfloat16 else 8
    if n <= sub:
        tile = n                                  # single full-array block
    elif n <= 2 * tile_n:
        # >= 2 grid steps so the parallel axis shards across v7x's 2 TCs.
        tile = _round_up(pl.cdiv(n, 2), sub)
    else:
        tile = tile_n
    grid = (pl.cdiv(n, tile),)                    # last block may be partial

    in_specs = [pl.BlockSpec((tile, fin), lambda i: (i, 0))]
    operands = [x]
    for w, b in zip(ws, bs):
        # Constant block index across the grid => weights/biases stay resident
        # in VMEM (no re-DMA per tile); full-array blocks need no padding.
        in_specs.append(pl.BlockSpec(w.shape, lambda i: (0, 0)))
        in_specs.append(pl.BlockSpec(b.shape, lambda i: (0, 0)))
        operands.extend([w, b])

    return pl.pallas_call(
        _make_fused_mlp_kernel(relu_flags, mxu_dtype),
        out_shape=jax.ShapeDtypeStruct((n, n_classes), jnp.float32),
        grid=grid,
        in_specs=in_specs,
        out_specs=pl.BlockSpec((tile, n_classes), lambda i: (i, 0)),
        compiler_params=pltpu.CompilerParams(
            dimension_semantics=("parallel",),
        ),
    )(*operands)


# ---------------------------------------------------------------------------
# Parameter construction (deterministic, synthetic — no checkpoint load)
# ---------------------------------------------------------------------------
def init_mlp_addr_params(key, n_features, fcs_hidden, n_classes, bias, do_bn):
    """FCsBlock params. BatchNorm1d (eval mode) folded into the Linear."""
    params = []
    dims = [n_features] + list(fcs_hidden) + [n_classes]
    eps = 1e-5
    for li in range(len(dims) - 1):
        fin, fout = dims[li], dims[li + 1]
        key, kw, kb, kg, kbeta, km, kv = jax.random.split(key, 7)
        bound = 1.0 / jnp.sqrt(fin)
        w = jax.random.uniform(kw, (fin, fout), jnp.float32, -bound, bound)
        b = (jax.random.uniform(kb, (fout,), jnp.float32, -bound, bound)
             if bias else jnp.zeros((fout,), jnp.float32))

        is_last = li == len(dims) - 2
        if do_bn and not is_last:
            # BN eval: y = gamma * (x - mean) / sqrt(var+eps) + beta  (folded)
            gamma = 1.0 + 0.01 * jax.random.normal(kg, (fout,), jnp.float32)
            beta = 0.01 * jax.random.normal(kbeta, (fout,), jnp.float32)
            mean = 0.01 * jax.random.normal(km, (fout,), jnp.float32)
            var = 1.0 + 0.01 * jax.random.uniform(kv, (fout,), jnp.float32)
            scale = gamma / jnp.sqrt(var + eps)
            w = w * scale[None, :]
            b = (b - mean) * scale + beta
        params.append((w, b, not is_last))  # (weight, bias, apply_relu)
    return params


# ---------------------------------------------------------------------------
# MLP_addr forward (mirrors the PyTorch module's forward)
# ---------------------------------------------------------------------------
def mlp_addr_forward(prepared, hetero_data, hyper_data=None):
    """tx_x = self.fcs(hetero_data['address'].x)"""
    x = hetero_data["address"]  # [N, n_features]
    # TODO(synk): training-mode Dropout not implemented (identity at inference).
    return mlp_addr_fused(x, prepared)


# Pure-JAX reference for correctness checking.
def mlp_addr_reference(params, x):
    for w, b, relu in params:
        x = x @ w + b[None, :]
        if relu:
            x = jnp.maximum(x, 0.0)
    return x


if __name__ == "__main__":
    # Shapes consistent with the module:
    #   n_features = 32, fcs_hidden = (64, 32), n_classes = 4
    n_features = 32
    fcs_hidden = (64, 32)
    n_classes = 4
    bias = True
    do_bn = True

    key = jax.random.PRNGKey(0)
    kparams, kx_small, kx_large = jax.random.split(key, 3)
    params = init_mlp_addr_params(kparams, n_features, fcs_hidden, n_classes,
                                  bias, do_bn)

    prep_f32 = prepare_params(params, mxu_dtype=jnp.float32)    # validation path
    prep_bf16 = prepare_params(params, mxu_dtype=jnp.bfloat16)  # production path

    # Small case (tiny address-node count) and a moderate case that exercises
    # the multi-step grid + partial last block path.
    for n_nodes, kx in ((8, kx_small), (300, kx_large)):
        x = jax.random.normal(kx, (n_nodes, n_features), jnp.float32)
        hetero_data = {"address": x}
        ref = mlp_addr_reference(params, x)

        out32 = jax.block_until_ready(mlp_addr_forward(prep_f32, hetero_data))
        assert out32.shape == (n_nodes, n_classes), out32.shape
        assert jnp.allclose(out32, ref, atol=1e-4, rtol=1e-4), "f32 mismatch vs reference"

        out16 = jax.block_until_ready(mlp_addr_forward(prep_bf16, hetero_data))
        assert out16.shape == (n_nodes, n_classes), out16.shape
        assert jnp.allclose(out16, ref, atol=5e-2, rtol=5e-2), "bf16 mismatch vs reference"

    print("KERNEL_OK")
</pallas_src>

<mosaic_0001>
module attributes {stable_mosaic.version = 11 : i64} {
  func.func @kernel(%arg0: i32, %arg1: memref<8x32xf32, #tpu.memory_space<vmem>>, %arg2: memref<32x64xf32, #tpu.memory_space<vmem>>, %arg3: memref<1x64xf32, #tpu.memory_space<vmem>>, %arg4: memref<64x32xf32, #tpu.memory_space<vmem>>, %arg5: memref<1x32xf32, #tpu.memory_space<vmem>>, %arg6: memref<32x4xf32, #tpu.memory_space<vmem>>, %arg7: memref<1x4xf32, #tpu.memory_space<vmem>>, %arg8: memref<8x4xf32, #tpu.memory_space<vmem>>) attributes {dimension_semantics = [#tpu.dimension_semantics<parallel>], iteration_bounds = array<i64: 1>, scalar_prefetch = 0 : i64, scratch_operands = 0 : i64, tpu.core_type = #tpu.core_type<tc>, window_params = [{transform_indices = @transform_0, window_bounds = array<i64: 8, 32>}, {pipeline_mode = #tpu.pipeline_mode<synchronous>, transform_indices = @transform_1, window_bounds = array<i64: 32, 64>}, {pipeline_mode = #tpu.pipeline_mode<synchronous>, transform_indices = @transform_2, window_bounds = array<i64: 1, 64>}, {pipeline_mode = #tpu.pipeline_mode<synchronous>, transform_indices = @transform_3, window_bounds = array<i64: 64, 32>}, {pipeline_mode = #tpu.pipeline_mode<synchronous>, transform_indices = @transform_4, window_bounds = array<i64: 1, 32>}, {pipeline_mode = #tpu.pipeline_mode<synchronous>, transform_indices = @transform_5, window_bounds = array<i64: 32, 4>}, {pipeline_mode = #tpu.pipeline_mode<synchronous>, transform_indices = @transform_6, window_bounds = array<i64: 1, 4>}, {transform_indices = @transform_7, window_bounds = array<i64: 8, 4>}]} {
    %c0 = arith.constant 0 : index
    %c0_0 = arith.constant 0 : index
    %0 = vector.load %arg1[%c0, %c0_0] : memref<8x32xf32, #tpu.memory_space<vmem>>, vector<8x32xf32>
    %c0_1 = arith.constant 0 : index
    %c0_2 = arith.constant 0 : index
    %1 = vector.load %arg2[%c0_1, %c0_2] : memref<32x64xf32, #tpu.memory_space<vmem>>, vector<32x64xf32>
    %c0_3 = arith.constant 0 : index
    %c0_4 = arith.constant 0 : index
    %2 = vector.load %arg3[%c0_3, %c0_4] : memref<1x64xf32, #tpu.memory_space<vmem>>, vector<1x64xf32>
    %cst = arith.constant dense<0.000000e+00> : vector<8x64xf32>
    %3 = tpu.matmul %0, %1, %cst {dimension_numbers = #tpu.dot_dimension_numbers<[1], [0], [0], [1], [0, 0, 1, 1], [], []>} : vector<8x32xf32>, vector<32x64xf32>, vector<8x64xf32> -> vector<8x64xf32>
    %4 = vector.broadcast %2 : vector<1x64xf32> to vector<8x64xf32>
    %5 = arith.addf %3, %4 : vector<8x64xf32>
    %cst_5 = arith.constant 0.000000e+00 : f32
    %6 = vector.broadcast %cst_5 : f32 to vector<8x64xf32>
    %7 = arith.maximumf %5, %6 : vector<8x64xf32>
    %c0_6 = arith.constant 0 : index
    %c0_7 = arith.constant 0 : index
    %8 = vector.load %arg4[%c0_6, %c0_7] : memref<64x32xf32, #tpu.memory_space<vmem>>, vector<64x32xf32>
    %c0_8 = arith.constant 0 : index
    %c0_9 = arith.constant 0 : index
    %9 = vector.load %arg5[%c0_8, %c0_9] : memref<1x32xf32, #tpu.memory_space<vmem>>, vector<1x32xf32>
    %cst_10 = arith.constant dense<0.000000e+00> : vector<8x32xf32>
    %10 = tpu.matmul %7, %8, %cst_10 {dimension_numbers = #tpu.dot_dimension_numbers<[1], [0], [0], [1], [0, 0, 1, 1], [], []>} : vector<8x64xf32>, vector<64x32xf32>, vector<8x32xf32> -> vector<8x32xf32>
    %11 = vector.broadcast %9 : vector<1x32xf32> to vector<8x32xf32>
    %12 = arith.addf %10, %11 : vector<8x32xf32>
    %cst_11 = arith.constant 0.000000e+00 : f32
    %13 = vector.broadcast %cst_11 : f32 to vector<8x32xf32>
    %14 = arith.maximumf %12, %13 : vector<8x32xf32>
    %c0_12 = arith.constant 0 : index
    %c0_13 = arith.constant 0 : index
    %15 = vector.load %arg6[%c0_12, %c0_13] : memref<32x4xf32, #tpu.memory_space<vmem>>, vector<32x4xf32>
    %c0_14 = arith.constant 0 : index
    %c0_15 = arith.constant 0 : index
    %16 = vector.load %arg7[%c0_14, %c0_15] : memref<1x4xf32, #tpu.memory_space<vmem>>, vector<1x4xf32>
    %cst_16 = arith.constant dense<0.000000e+00> : vector<8x4xf32>
    %17 = tpu.matmul %14, %15, %cst_16 {dimension_numbers = #tpu.dot_dimension_numbers<[1], [0], [0], [1], [0, 0, 1, 1], [], []>} : vector<8x32xf32>, vector<32x4xf32>, vector<8x4xf32> -> vector<8x4xf32>
    %18 = vector.broadcast %16 : vector<1x4xf32> to vector<8x4xf32>
    %19 = arith.addf %17, %18 : vector<8x4xf32>
    %c0_17 = arith.constant 0 : index
    %c0_18 = arith.constant 0 : index
    %20 = vector.load %arg8[%c0_17, %c0_18] : memref<8x4xf32, #tpu.memory_space<vmem>>, vector<8x4xf32>
    tpu.vector_store %arg8[%c0_17, %c0_18], %19 {strides = array<i32>} : memref<8x4xf32, #tpu.memory_space<vmem>>, vector<8x4xf32>,
    return
  }
  func.func @transform_0(%arg0: i32) -> (i32, i32) {
    %c0_i32 = arith.constant 0 : i32
    %c0_i32_0 = arith.constant 0 : i32
    return %arg0, %c0_i32 : i32, i32
  }
  func.func @transform_1(%arg0: i32) -> (i32, i32) {
    %c0_i32 = arith.constant 0 : i32
    %c0_i32_0 = arith.constant 0 : i32
    %c0_i32_1 = arith.constant 0 : i32
    return %c0_i32, %c0_i32_0 : i32, i32
  }
  func.func @transform_2(%arg0: i32) -> (i32, i32) {
    %c0_i32 = arith.constant 0 : i32
    %c0_i32_0 = arith.constant 0 : i32
    %c0_i32_1 = arith.constant 0 : i32
    return %c0_i32, %c0_i32_0 : i32, i32
  }
  func.func @transform_3(%arg0: i32) -> (i32, i32) {
    %c0_i32 = arith.constant 0 : i32
    %c0_i32_0 = arith.constant 0 : i32
    %c0_i32_1 = arith.constant 0 : i32
    return %c0_i32, %c0_i32_0 : i32, i32
  }
  func.func @transform_4(%arg0: i32) -> (i32, i32) {
    %c0_i32 = arith.constant 0 : i32
    %c0_i32_0 = arith.constant 0 : i32
    %c0_i32_1 = arith.constant 0 : i32
    return %c0_i32, %c0_i32_0 : i32, i32
  }
  func.func @transform_5(%arg0: i32) -> (i32, i32) {
    %c0_i32 = arith.constant 0 : i32
    %c0_i32_0 = arith.constant 0 : i32
    %c0_i32_1 = arith.constant 0 : i32
    return %c0_i32, %c0_i32_0 : i32, i32
  }
  func.func @transform_6(%arg0: i32) -> (i32, i32) {
    %c0_i32 = arith.constant 0 : i32
    %c0_i32_0 = arith.constant 0 : i32
    %c0_i32_1 = arith.constant 0 : i32
    return %c0_i32, %c0_i32_0 : i32, i32
  }
  func.func @transform_7(%arg0: i32) -> (i32, i32) {
    %c0_i32 = arith.constant 0 : i32
    %c0_i32_0 = arith.constant 0 : i32
    return %arg0, %c0_i32 : i32, i32
  }
}

</mosaic_0001>

<llo_original>
// kernel: tpu_custom_call.1
$region0: #{tpu_custom_call.1}
  #allocation0 [shape = 'u32[]', space=smem, size = 0x4, offset = 0x4, fixed_abs, tag = 'smem constant byte address 0x4 - core index']
  #allocation1 [shape = 'u32[144,128]{1,0:T(1,128)}', space=vmem, size = 0x12000, scoped, tag = 'internal scratch']
  %s0 = inlined_call_operand.vmem [shape: f32[8,32], index: 0, kind: input, shape index: {}]
  %s1 = inlined_call_operand.vmem [shape: f32[32,64], index: 1, kind: input, shape index: {}]
  %s2 = inlined_call_operand.vmem [shape: f32[1,64], index: 2, kind: input, shape index: {}]
  %s3 = inlined_call_operand.vmem [shape: f32[64,32], index: 3, kind: input, shape index: {}]
  %s4 = inlined_call_operand.vmem [shape: f32[1,32], index: 4, kind: input, shape index: {}]
  %s5 = inlined_call_operand.vmem [shape: f32[32,4], index: 5, kind: input, shape index: {}]
  %s6 = inlined_call_operand.vmem [shape: f32[1,4], index: 6, kind: input, shape index: {}]
  %s7 = inlined_call_operand.vmem [shape: f32[8,4], index: 7, kind: output, shape index: {}]
  %s8 = sld [smem:[#allocation0]]
  $region38: #{tpu_custom_call.1} parent=0
    _
  %s10 = ssub.s32 1, %s8
  %s11 = scalar_select 0, %s10, %s8
  // Predicated region
  $region2: #{tpu_custom_call.1} parent=0 // pred_check
    _
  $region3: #{tpu_custom_call.1} parent=0 // pred_check_branch
    %13 = sbr.rel (0) target = $region5
  $region4: #{tpu_custom_call.1} parent=0 // pred_region
    _
  $region5: #{tpu_custom_call.1} parent=0 // pred_fallthru
    _
  // Predicated region
  $region6: #{tpu_custom_call.1} parent=0 // pred_check
    _
  $region7: #{tpu_custom_call.1} parent=0 // pred_check_branch
    %15 = sbr.rel (0) target = $region9
  $region8: #{tpu_custom_call.1} parent=0 // pred_region
    _
  $region9: #{tpu_custom_call.1} parent=0 // pred_fallthru
    _
  // Predicated region
  $region10: #{tpu_custom_call.1} parent=0 // pred_check
    _
  $region11: #{tpu_custom_call.1} parent=0 // pred_check_branch
    %17 = sbr.rel (0) target = $region13
  $region12: #{tpu_custom_call.1} parent=0 // pred_region
    _
  $region13: #{tpu_custom_call.1} parent=0 // pred_fallthru
    _
  // Predicated region
  $region14: #{tpu_custom_call.1} parent=0 // pred_check
    _
  $region15: #{tpu_custom_call.1} parent=0 // pred_check_branch
    %19 = sbr.rel (0) target = $region17
  $region16: #{tpu_custom_call.1} parent=0 // pred_region
    _
  $region17: #{tpu_custom_call.1} parent=0 // pred_fallthru
    _
  // Predicated region
  $region18: #{tpu_custom_call.1} parent=0 // pred_check
    _
  $region19: #{tpu_custom_call.1} parent=0 // pred_check_branch
    %21 = sbr.rel (0) target = $region21
  $region20: #{tpu_custom_call.1} parent=0 // pred_region
    _
  $region21: #{tpu_custom_call.1} parent=0 // pred_fallthru
    _
  // Predicated region
  $region22: #{tpu_custom_call.1} parent=0 // pred_check
    _
  $region23: #{tpu_custom_call.1} parent=0 // pred_check_branch
    %23 = sbr.rel (0) target = $region25
  $region24: #{tpu_custom_call.1} parent=0 // pred_region
    _
  $region25: #{tpu_custom_call.1} parent=0 // pred_fallthru
    _
  // Predicated region
  $region26: #{tpu_custom_call.1} parent=0 // pred_check
    _
  $region27: #{tpu_custom_call.1} parent=0 // pred_check_branch
    %25 = sbr.rel (0) target = $region29
  $region28: #{tpu_custom_call.1} parent=0 // pred_region
    _
  $region29: #{tpu_custom_call.1} parent=0 // pred_fallthru
    _
  %v26 = vld [vmem:[%s0] sm:$0xff]
  %v27 = vld [vmem:[%s1] sm:$0xff]
  %v28 = vld [vmem:[%s1 + $0x8] sm:$0xff]
  %v29 = vld [vmem:[%s1 + $0x10] sm:$0xff]
  %v30 = vld [vmem:[%s1 + $0x18] sm:$0xff]
  %v31 = vld [vmem:[%s2] sm:$0x1]
  %v33 = vlaneseq
  %v34 = vshrl.u32 %v33, 7
  %v35 = vsub.s32 0, %v34
  %v36 = vrot.slane %v31, %v35
  %vm38 = vcmask 261120
  %v40 = vsel %vm38, %v26, 0
  %42 = vmatprep.subr.mxu0 0.0
  %43 = vmatpush1.msra.mxu0 0.0
  %44 = vmatprep.subr.mxu0 0.0
  %45 = vmatpush1.msra.mxu0 0.0
  %46 = vmatprep.subr.mxu0 0.0
  %47 = vmatpush1.msra.mxu0 0.0
  %48 = vmatprep.subr.mxu0 0.0
  %49 = vmatpush1.msra.mxu0 0.0
  %50 = vmatprep.subr.mxu0 0.0
  %51 = vmatpush1.msra.mxu0 0.0
  %52 = vmatprep.subr.mxu0 0.0
  %53 = vmatpush1.msra.mxu0 0.0
  %54 = vmatprep.subr.mxu0 0.0
  %55 = vmatpush1.msra.mxu0 0.0
  %56 = vmatprep.subr.mxu0 0.0
  %57 = vmatpush1.msra.mxu0 0.0
  %58 = vmatprep.subr.mxu0 0.0
  %59 = vmatpush1.msra.mxu0 0.0
  %60 = vmatprep.subr.mxu0 0.0
  %61 = vmatpush1.msra.mxu0 0.0
  %62 = vmatprep.subr.mxu0 0.0
  %63 = vmatpush1.msra.mxu0 0.0
  %64 = vmatprep.subr.mxu0 0.0
  %65 = vmatpush1.msra.mxu0 0.0
  %66 = vmatprep.subr.mxu0 0.0
  %67 = vmatpush1.msra.mxu0 %v30
  %68 = vmatprep.subr.mxu0 0.0
  %69 = vmatpush1.msra.mxu0 %v29
  %70 = vmatprep.subr.mxu0 0.0
  %71 = vmatpush1.msra.mxu0 %v28
  %72 = vmatprep.subr.mxu0 0.0
  %73 = vmatpush1.msra.mxu0 %v27
  %74 = vmatprep.subr.mxu0 0.0
  %75 = vmatpush2.msra.mxu0 0.0
  %76 = vmatprep.subr.mxu0 0.0
  %77 = vmatpush2.msra.mxu0 0.0
  %78 = vmatprep.subr.mxu0 0.0
  %79 = vmatpush2.msra.mxu0 0.0
  %80 = vmatprep.subr.mxu0 0.0
  %81 = vmatpush2.msra.mxu0 0.0
  %82 = vmatprep.subr.mxu0 0.0
  %83 = vmatpush2.msra.mxu0 0.0
  %84 = vmatprep.subr.mxu0 0.0
  %85 = vmatpush2.msra.mxu0 0.0
  %86 = vmatprep.subr.mxu0 0.0
  %87 = vmatpush2.msra.mxu0 0.0
  %88 = vmatprep.subr.mxu0 0.0
  %89 = vmatpush2.msra.mxu0 0.0
  %90 = vmatprep.subr.mxu0 0.0
  %91 = vmatpush2.msra.mxu0 0.0
  %92 = vmatprep.subr.mxu0 0.0
  %93 = vmatpush2.msra.mxu0 0.0
  %94 = vmatprep.subr.mxu0 0.0
  %95 = vmatpush2.msra.mxu0 0.0
  %96 = vmatprep.subr.mxu0 0.0
  %97 = vmatpush2.msra.mxu0 0.0
  %98 = vmatprep.subr.mxu0 0.0
  %99 = vmatpush2.msra.mxu0 0.0
  %100 = vmatprep.subr.mxu0 0.0
  %101 = vmatpush2.msra.mxu0 0.0
  %102 = vmatprep.subr.mxu0 0.0
  %103 = vmatpush2.msra.mxu0 0.0
  %104 = vmatprep.subr.mxu0 0.0
  %105 = vmatpush2.msra.mxu0 0.0
  %106 = vmatprep.mubr.f32.mxu0 0.0
  %107 = vmatmul.mubr.f32.gmra.mxu0 %v40
  %v108 = vpop.f32.mrf.mxu0
  %v109 = vadd.f32 %v36, %v108
  %v110 = vpop.f32.mrf.mxu0
  %111 = vdwg.mxu0
  %v112 = vmax.f32 %v109, 0.0
  %v113 = vld [vmem:[%s3] sm:$0xff]
  %v114 = vld [vmem:[%s3 + $0x8] sm:$0xff]
  %v115 = vld [vmem:[%s3 + $0x10] sm:$0xff]
  %v116 = vld [vmem:[%s3 + $0x18] sm:$0xff]
  %v117 = vld [vmem:[%s3 + $0x20] sm:$0xff]
  %v118 = vld [vmem:[%s3 + $0x28] sm:$0xff]
  %v119 = vld [vmem:[%s3 + $0x30] sm:$0xff]
  %v120 = vld [vmem:[%s3 + $0x38] sm:$0xff]
  %v121 = vld [vmem:[%s4] sm:$0x1]
  %v123 = vlaneseq
  %v124 = vshrl.u32 %v123, 7
  %v125 = vsub.s32 0, %v124
  %v126 = vrot.slane %v121, %v125
  %vm128 = vcmask 523264
  %v130 = vsel %vm128, %v112, 0
  %132 = vmatprep.subr.mxu0 0.0
  %133 = vmatpush1.msra.mxu0 0.0
  %134 = vmatprep.subr.mxu0 0.0
  %135 = vmatpush1.msra.mxu0 0.0
  %136 = vmatprep.subr.mxu0 0.0
  %137 = vmatpush1.msra.mxu0 0.0
  %138 = vmatprep.subr.mxu0 0.0
  %139 = vmatpush1.msra.mxu0 0.0
  %140 = vmatprep.subr.mxu0 0.0
  %141 = vmatpush1.msra.mxu0 0.0
  %142 = vmatprep.subr.mxu0 0.0
  %143 = vmatpush1.msra.mxu0 0.0
  %144 = vmatprep.subr.mxu0 0.0
  %145 = vmatpush1.msra.mxu0 0.0
  %146 = vmatprep.subr.mxu0 0.0
  %147 = vmatpush1.msra.mxu0 0.0
  %148 = vmatprep.subr.mxu0 0.0
  %149 = vmatpush1.msra.mxu0 %v120
  %150 = vmatprep.subr.mxu0 0.0
  %151 = vmatpush1.msra.mxu0 %v119
  %152 = vmatprep.subr.mxu0 0.0
  %153 = vmatpush1.msra.mxu0 %v118
  %154 = vmatprep.subr.mxu0 0.0
  %155 = vmatpush1.msra.mxu0 %v117
  %156 = vmatprep.subr.mxu0 0.0
  %157 = vmatpush1.msra.mxu0 %v116
  %158 = vmatprep.subr.mxu0 0.0
  %159 = vmatpush1.msra.mxu0 %v115
  %160 = vmatprep.subr.mxu0 0.0
  %161 = vmatpush1.msra.mxu0 %v114
  %162 = vmatprep.subr.mxu0 0.0
  %163 = vmatpush1.msra.mxu0 %v113
  %164 = vmatprep.subr.mxu0 0.0
  %165 = vmatpush2.msra.mxu0 0.0
  %166 = vmatprep.subr.mxu0 0.0
  %167 = vmatpush2.msra.mxu0 0.0
  %168 = vmatprep.subr.mxu0 0.0
  %169 = vmatpush2.msra.mxu0 0.0
  %170 = vmatprep.subr.mxu0 0.0
  %171 = vmatpush2.msra.mxu0 0.0
  %172 = vmatprep.subr.mxu0 0.0
  %173 = vmatpush2.msra.mxu0 0.0
  %174 = vmatprep.subr.mxu0 0.0
  %175 = vmatpush2.msra.mxu0 0.0
  %176 = vmatprep.subr.mxu0 0.0
  %177 = vmatpush2.msra.mxu0 0.0
  %178 = vmatprep.subr.mxu0 0.0
  %179 = vmatpush2.msra.mxu0 0.0
  %180 = vmatprep.subr.mxu0 0.0
  %181 = vmatpush2.msra.mxu0 0.0
  %182 = vmatprep.subr.mxu0 0.0
  %183 = vmatpush2.msra.mxu0 0.0
  %184 = vmatprep.subr.mxu0 0.0
  %185 = vmatpush2.msra.mxu0 0.0
  %186 = vmatprep.subr.mxu0 0.0
  %187 = vmatpush2.msra.mxu0 0.0
  %188 = vmatprep.subr.mxu0 0.0
  %189 = vmatpush2.msra.mxu0 0.0
  %190 = vmatprep.subr.mxu0 0.0
  %191 = vmatpush2.msra.mxu0 0.0
  %192 = vmatprep.subr.mxu0 0.0
  %193 = vmatpush2.msra.mxu0 0.0
  %194 = vmatprep.subr.mxu0 0.0
  %195 = vmatpush2.msra.mxu0 0.0
  %196 = vmatprep.mubr.f32.mxu0 0.0
  %197 = vmatmul.mubr.f32.gmra.mxu0 %v130
  %v198 = vpop.f32.mrf.mxu0
  %v199 = vadd.f32 %v126, %v198
  %v200 = vpop.f32.mrf.mxu0
  %201 = vdwg.mxu0
  %v202 = vmax.f32 %v199, 0.0
  %v203 = vld [vmem:[%s5] sm:$0xff]
  %v204 = vld [vmem:[%s5 + $0x8] sm:$0xff]
  %v205 = vld [vmem:[%s5 + $0x10] sm:$0xff]
  %v206 = vld [vmem:[%s5 + $0x18] sm:$0xff]
  %v207 = vld [vmem:[%s6] sm:$0x1]
  %v209 = vlaneseq
  %v210 = vshrl.u32 %v209, 7
  %v211 = vsub.s32 0, %v210
  %v212 = vrot.slane %v207, %v211
  %v215 = vsel %vm38, %v202, 0
  %217 = vmatprep.subr.mxu0 0.0
  %218 = vmatpush1.msra.mxu0 0.0
  %219 = vmatprep.subr.mxu0 0.0
  %220 = vmatpush1.msra.mxu0 0.0
  %221 = vmatprep.subr.mxu0 0.0
  %222 = vmatpush1.msra.mxu0 0.0
  %223 = vmatprep.subr.mxu0 0.0
  %224 = vmatpush1.msra.mxu0 0.0
  %225 = vmatprep.subr.mxu0 0.0
  %226 = vmatpush1.msra.mxu0 0.0
  %227 = vmatprep.subr.mxu0 0.0
  %228 = vmatpush1.msra.mxu0 0.0
  %229 = vmatprep.subr.mxu0 0.0
  %230 = vmatpush1.msra.mxu0 0.0
  %231 = vmatprep.subr.mxu0 0.0
  %232 = vmatpush1.msra.mxu0 0.0
  %233 = vmatprep.subr.mxu0 0.0
  %234 = vmatpush1.msra.mxu0 0.0
  %235 = vmatprep.subr.mxu0 0.0
  %236 = vmatpush1.msra.mxu0 0.0
  %237 = vmatprep.subr.mxu0 0.0
  %238 = vmatpush1.msra.mxu0 0.0
  %239 = vmatprep.subr.mxu0 0.0
  %240 = vmatpush1.msra.mxu0 0.0
  %241 = vmatprep.subr.mxu0 0.0
  %242 = vmatpush1.msra.mxu0 %v206
  %243 = vmatprep.subr.mxu0 0.0
  %244 = vmatpush1.msra.mxu0 %v205
  %245 = vmatprep.subr.mxu0 0.0
  %246 = vmatpush1.msra.mxu0 %v204
  %247 = vmatprep.subr.mxu0 0.0
  %248 = vmatpush1.msra.mxu0 %v203
  %249 = vmatprep.subr.mxu0 0.0
  %250 = vmatpush2.msra.mxu0 0.0
  %251 = vmatprep.subr.mxu0 0.0
  %252 = vmatpush2.msra.mxu0 0.0
  %253 = vmatprep.subr.mxu0 0.0
  %254 = vmatpush2.msra.mxu0 0.0
  %255 = vmatprep.subr.mxu0 0.0
  %256 = vmatpush2.msra.mxu0 0.0
  %257 = vmatprep.subr.mxu0 0.0
  %258 = vmatpush2.msra.mxu0 0.0
  %259 = vmatprep.subr.mxu0 0.0
  %260 = vmatpush2.msra.mxu0 0.0
  %261 = vmatprep.subr.mxu0 0.0
  %262 = vmatpush2.msra.mxu0 0.0
  %263 = vmatprep.subr.mxu0 0.0
  %264 = vmatpush2.msra.mxu0 0.0
  %265 = vmatprep.subr.mxu0 0.0
  %266 = vmatpush2.msra.mxu0 0.0
  %267 = vmatprep.subr.mxu0 0.0
  %268 = vmatpush2.msra.mxu0 0.0
  %269 = vmatprep.subr.mxu0 0.0
  %270 = vmatpush2.msra.mxu0 0.0
  %271 = vmatprep.subr.mxu0 0.0
  %272 = vmatpush2.msra.mxu0 0.0
  %273 = vmatprep.subr.mxu0 0.0
  %274 = vmatpush2.msra.mxu0 0.0
  %275 = vmatprep.subr.mxu0 0.0
  %276 = vmatpush2.msra.mxu0 0.0
  %277 = vmatprep.subr.mxu0 0.0
  %278 = vmatpush2.msra.mxu0 0.0
  %279 = vmatprep.subr.mxu0 0.0
  %280 = vmatpush2.msra.mxu0 0.0
  %281 = vmatprep.mubr.f32.mxu0 0.0
  %282 = vmatmul.mubr.f32.gmra.mxu0 %v215
  %v283 = vpop.f32.mrf.mxu0
  %v284 = vadd.f32 %v212, %v283
  %v285 = vpop.f32.mrf.mxu0
  %286 = vdwg.mxu0
  %vm287 = vcmask 31744
  %288 = vst.msk [vmem:[%s7] sm:$0xff] %vm287, %v284
  // Predicated region
  $region30: #{tpu_custom_call.1} parent=0 // pred_check
    _
  $region31: #{tpu_custom_call.1} parent=0 // pred_check_branch
    %290 = sbr.rel (0) target = $region33
  $region32: #{tpu_custom_call.1} parent=0 // pred_region
    _
  $region33: #{tpu_custom_call.1} parent=0 // pred_fallthru
    _
  // Predicated region
  $region34: #{tpu_custom_call.1} parent=0 // pred_check
    _
  $region35: #{tpu_custom_call.1} parent=0 // pred_check_branch
    %292 = sbr.rel (0) target = $region37
  $region36: #{tpu_custom_call.1} parent=0 // pred_region
    _
  $region37: #{tpu_custom_call.1} parent=0 // pred_fallthru
    _

</llo_original>
